<compile_context>
chip_gen: v7x
topology: tpu7x:2x2x1
jax: 0.10.0
libtpu: 0.0.40
codegen_flags: <defaults>
</compile_context>

<pallas_src>
import jax
import jax.numpy as jnp
from jax.experimental import pallas as pl
from jax.experimental.pallas import tpu as pltpu


def _round_up(x: int, m: int) -> int:
    return ((x + m - 1) // m) * m


def _label_head_kernel(f_ref, w_ref, o_ref):
    # f_ref: (TB, E)  features tile
    # w_ref: (TL, E)  label-embedding tile (stored [L, E], contract on E)
    # o_ref: (TB, TL) logits tile
    o_ref[...] = jax.lax.dot_general(
        f_ref[...],
        w_ref[...],
        dimension_numbers=(((1,), (1,)), ((), ())),  # contract E with E
        preferred_element_type=jnp.float32,
    ).astype(o_ref.dtype)


def label_embedding_head(
    features: jax.Array,
    label_embeddings: jax.Array,
    *,
    tb: int = 256,   # batch tile (multiple of 8)
    tl: int = 512,   # label tile (multiple of 128, lane-dense output)
) -> jax.Array:
    """features: [B, E], label_embeddings: [L, E] -> logits [B, L]."""
    B, E = features.shape
    L, E2 = label_embeddings.shape
    assert E == E2, "embed_dim mismatch"

    # Pad to TPU-friendly extents: B -> multiple of 8 (sublane),
    # L -> multiple of 128 (lane-dense output stores).
    Bp = _round_up(B, 8)
    Lp = _round_up(L, 128)
    TB = min(tb, Bp)
    TL = min(tl, Lp)
    Bp = _round_up(Bp, TB)
    Lp = _round_up(Lp, TL)

    f = features
    if Bp != B:
        f = jnp.pad(f, ((0, Bp - B), (0, 0)))
    w = label_embeddings
    if Lp != L:
        w = jnp.pad(w, ((0, Lp - L), (0, 0)))

    grid = (Bp // TB, Lp // TL)
    itemsize = jnp.dtype(features.dtype).itemsize

    out = pl.pallas_call(
        _label_head_kernel,
        out_shape=jax.ShapeDtypeStruct((Bp, Lp), features.dtype),
        grid=grid,
        in_specs=[
            pl.BlockSpec((TB, E), lambda i, j: (i, 0)),   # features tile
            pl.BlockSpec((TL, E), lambda i, j: (j, 0)),   # label table tile
        ],
        out_specs=pl.BlockSpec((TB, TL), lambda i, j: (i, j)),
        compiler_params=pltpu.CompilerParams(
            # Both grid axes are fully independent (no reduction axis:
            # E is contracted wholly inside each kernel invocation).
            dimension_semantics=("parallel", "parallel"),
        ),
        cost_estimate=pl.CostEstimate(
            flops=2 * Bp * E * Lp,
            transcendentals=0,
            bytes_accessed=(Bp * E + Lp * E + Bp * Lp) * itemsize,
        ),
    )(f, w)

    if Bp != B or Lp != L:
        out = out[:B, :L]
    return out


if __name__ == "__main__":
    # Shapes implied by the module's forward:
    #   features:          [batch_size, embed_dim]   = [8, 32]
    #   label_embeddings:  [num_labels, embed_dim]   = [16, 32]
    batch_size, embed_dim, num_labels = 8, 32, 16

    key = jax.random.PRNGKey(0)
    k_feat, k_emb = jax.random.split(key)

    features = jax.random.normal(k_feat, (batch_size, embed_dim), dtype=jnp.float32)
    # Deterministic init mirroring torch.randn(num_labels, embed_dim).
    label_embeddings = jax.random.normal(
        k_emb, (num_labels, embed_dim), dtype=jnp.float32
    )

    logits = label_embedding_head(features, label_embeddings)
    jax.block_until_ready(logits)

    # Reference: features @ W.T
    ref = features @ label_embeddings.T
    assert logits.shape == (batch_size, num_labels)
    assert jnp.allclose(logits, ref, atol=1e-5, rtol=1e-5)

    print("KERNEL_OK")
</pallas_src>

<mosaic_0001>
module attributes {stable_mosaic.version = 11 : i64} {
  func.func @_label_head_kernel(%arg0: i32, %arg1: i32, %arg2: memref<8x32xf32, #tpu.memory_space<vmem>>, %arg3: memref<128x32xf32, #tpu.memory_space<vmem>>, %arg4: memref<8x128xf32, #tpu.memory_space<vmem>>) attributes {dimension_semantics = [#tpu.dimension_semantics<parallel>, #tpu.dimension_semantics<parallel>], iteration_bounds = array<i64: 1, 1>, scalar_prefetch = 0 : i64, scratch_operands = 0 : i64, tpu.core_type = #tpu.core_type<tc>, window_params = [{transform_indices = @transform_0, window_bounds = array<i64: 8, 32>}, {transform_indices = @transform_1, window_bounds = array<i64: 128, 32>}, {transform_indices = @transform_2, window_bounds = array<i64: 8, 128>}]} {
    %c0 = arith.constant 0 : index
    %c0_0 = arith.constant 0 : index
    %0 = vector.load %arg2[%c0, %c0_0] : memref<8x32xf32, #tpu.memory_space<vmem>>, vector<8x32xf32>
    %c0_1 = arith.constant 0 : index
    %c0_2 = arith.constant 0 : index
    %1 = vector.load %arg3[%c0_1, %c0_2] : memref<128x32xf32, #tpu.memory_space<vmem>>, vector<128x32xf32>
    %cst = arith.constant dense<0.000000e+00> : vector<8x128xf32>
    %2 = tpu.matmul %0, %1, %cst {dimension_numbers = #tpu.dot_dimension_numbers<[1], [1], [0], [0], [0, 0, 1, 0], [], []>} : vector<8x32xf32>, vector<128x32xf32>, vector<8x128xf32> -> vector<8x128xf32>
    %c0_3 = arith.constant 0 : index
    %c0_4 = arith.constant 0 : index
    %3 = vector.load %arg4[%c0_3, %c0_4] : memref<8x128xf32, #tpu.memory_space<vmem>>, vector<8x128xf32>
    tpu.vector_store %arg4[%c0_3, %c0_4], %2 {strides = array<i32>} : memref<8x128xf32, #tpu.memory_space<vmem>>, vector<8x128xf32>,
    return
  }
  func.func @transform_0(%arg0: i32, %arg1: i32) -> (i32, i32) {
    %c0_i32 = arith.constant 0 : i32
    %c0_i32_0 = arith.constant 0 : i32
    return %arg0, %c0_i32 : i32, i32
  }
  func.func @transform_1(%arg0: i32, %arg1: i32) -> (i32, i32) {
    %c0_i32 = arith.constant 0 : i32
    %c0_i32_0 = arith.constant 0 : i32
    return %arg1, %c0_i32 : i32, i32
  }
  func.func @transform_2(%arg0: i32, %arg1: i32) -> (i32, i32) {
    %c0_i32 = arith.constant 0 : i32
    return %arg0, %arg1 : i32, i32
  }
}

</mosaic_0001>

<llo_original>
// kernel: tpu_custom_call.1
$region0: #{tpu_custom_call.1}
  #allocation0 [shape = 'u32[]', space=smem, size = 0x4, offset = 0x4, fixed_abs, tag = 'smem constant byte address 0x4 - core index']
  #allocation1 [shape = 'u32[144,128]{1,0:T(1,128)}', space=vmem, size = 0x12000, scoped, tag = 'internal scratch']
  %s0 = inlined_call_operand.vmem [shape: f32[8,32], index: 0, kind: input, shape index: {}]
  %s1 = inlined_call_operand.vmem [shape: f32[128,32], index: 1, kind: input, shape index: {}]
  %s2 = inlined_call_operand.hbm [shape: f32[8,128], index: 2, kind: output, shape index: {}]
  %s3 = sld [smem:[#allocation0]]
  $region18: #{tpu_custom_call.1} parent=0
    _
  %s5 = ssub.s32 1, %s3
  %s6 = scalar_select 0, %s5, %s3
  $region1: #{tpu_custom_call.1} parent=0
    #allocation2 [shape = 'u8[4096]{0}', space=vmem, size = 0x1000, scoped, tag = 'output window, operand 0, single buffered']
    #allocation3 [shape = 's32[1]{0}', space=sflag, size = 0x4, scoped, tag = 'scoped memory for tpu_custom_call.1']
    %7 = vsyncpa [#allocation3], 0
    // Predicated region
    $region2: #{tpu_custom_call.1} parent=1 // pred_check
      _
    $region3: #{tpu_custom_call.1} parent=1 // pred_check_branch
      %9 = sbr.rel (0) target = $region5
    $region4: #{tpu_custom_call.1} parent=1 // pred_region
      _
    $region5: #{tpu_custom_call.1} parent=1 // pred_fallthru
      _
    // Predicated region
    $region6: #{tpu_custom_call.1} parent=1 // pred_check
      _
    $region7: #{tpu_custom_call.1} parent=1 // pred_check_branch
      %11 = sbr.rel (0) target = $region9
    $region8: #{tpu_custom_call.1} parent=1 // pred_region
      _
    $region9: #{tpu_custom_call.1} parent=1 // pred_fallthru
      _
    %v12 = vld [vmem:[%s0] sm:$0xff]
    %v13 = vld [vmem:[%s1] sm:$0xff]
    %v14 = vld [vmem:[%s1 + $0x8] sm:$0xff]
    %v15 = vld [vmem:[%s1 + $0x10] sm:$0xff]
    %v16 = vld [vmem:[%s1 + $0x18] sm:$0xff]
    %v17 = vld [vmem:[%s1 + $0x20] sm:$0xff]
    %v18 = vld [vmem:[%s1 + $0x28] sm:$0xff]
    %v19 = vld [vmem:[%s1 + $0x30] sm:$0xff]
    %v20 = vld [vmem:[%s1 + $0x38] sm:$0xff]
    %v21 = vld [vmem:[%s1 + $0x40] sm:$0xff]
    %v22 = vld [vmem:[%s1 + $0x48] sm:$0xff]
    %v23 = vld [vmem:[%s1 + $0x50] sm:$0xff]
    %v24 = vld [vmem:[%s1 + $0x58] sm:$0xff]
    %v25 = vld [vmem:[%s1 + $0x60] sm:$0xff]
    %v26 = vld [vmem:[%s1 + $0x68] sm:$0xff]
    %v27 = vld [vmem:[%s1 + $0x70] sm:$0xff]
    %v28 = vld [vmem:[%s1 + $0x78] sm:$0xff]
    %vm29 = vcmask 261120
    %v31 = vsel %vm29, %v12, 0
    %v34 = vsel %vm29, %v13, 0
    %v37 = vsel %vm29, %v14, 0
    %v40 = vsel %vm29, %v15, 0
    %v43 = vsel %vm29, %v16, 0
    %v46 = vsel %vm29, %v17, 0
    %v49 = vsel %vm29, %v18, 0
    %v52 = vsel %vm29, %v19, 0
    %v55 = vsel %vm29, %v20, 0
    %v58 = vsel %vm29, %v21, 0
    %v61 = vsel %vm29, %v22, 0
    %v64 = vsel %vm29, %v23, 0
    %v67 = vsel %vm29, %v24, 0
    %v70 = vsel %vm29, %v25, 0
    %v73 = vsel %vm29, %v26, 0
    %v76 = vsel %vm29, %v27, 0
    %v79 = vsel %vm29, %v28, 0
    %81 = vmatprep.subr.mxu0 0.0
    %82 = vmatpush1.xpose.msra.mxu0 %v34
    %83 = vmatprep.subr.mxu0 0.0
    %84 = vmatpush1.xpose.msra.mxu0 %v37
    %85 = vmatprep.subr.mxu0 0.0
    %86 = vmatpush1.xpose.msra.mxu0 %v40
    %87 = vmatprep.subr.mxu0 0.0
    %88 = vmatpush1.xpose.msra.mxu0 %v43
    %89 = vmatprep.subr.mxu0 0.0
    %90 = vmatpush1.xpose.msra.mxu0 %v46
    %91 = vmatprep.subr.mxu0 0.0
    %92 = vmatpush1.xpose.msra.mxu0 %v49
    %93 = vmatprep.subr.mxu0 0.0
    %94 = vmatpush1.xpose.msra.mxu0 %v52
    %95 = vmatprep.subr.mxu0 0.0
    %96 = vmatpush1.xpose.msra.mxu0 %v55
    %97 = vmatprep.subr.mxu0 0.0
    %98 = vmatpush1.xpose.msra.mxu0 %v58
    %99 = vmatprep.subr.mxu0 0.0
    %100 = vmatpush1.xpose.msra.mxu0 %v61
    %101 = vmatprep.subr.mxu0 0.0
    %102 = vmatpush1.xpose.msra.mxu0 %v64
    %103 = vmatprep.subr.mxu0 0.0
    %104 = vmatpush1.xpose.msra.mxu0 %v67
    %105 = vmatprep.subr.mxu0 0.0
    %106 = vmatpush1.xpose.msra.mxu0 %v70
    %107 = vmatprep.subr.mxu0 0.0
    %108 = vmatpush1.xpose.msra.mxu0 %v73
    %109 = vmatprep.subr.mxu0 0.0
    %110 = vmatpush1.xpose.msra.mxu0 %v76
    %111 = vmatprep.subr.mxu0 0.0
    %112 = vmatpush1.xpose.msra.mxu0 %v79
    %113 = vmatprep.subr.mxu0 0.0
    %114 = vmatpush1.xpose.msra.mxu0 0.0
    %115 = vmatprep.subr.mxu0 0.0
    %116 = vmatpush1.xpose.msra.mxu0 0.0
    %117 = vmatprep.subr.mxu0 0.0
    %118 = vmatpush1.xpose.msra.mxu0 0.0
    %119 = vmatprep.subr.mxu0 0.0
    %120 = vmatpush1.xpose.msra.mxu0 0.0
    %121 = vmatprep.subr.mxu0 0.0
    %122 = vmatpush1.xpose.msra.mxu0 0.0
    %123 = vmatprep.subr.mxu0 0.0
    %124 = vmatpush1.xpose.msra.mxu0 0.0
    %125 = vmatprep.subr.mxu0 0.0
    %126 = vmatpush1.xpose.msra.mxu0 0.0
    %127 = vmatprep.subr.mxu0 0.0
    %128 = vmatpush1.xpose.msra.mxu0 0.0
    %129 = vmatprep.subr.mxu0 0.0
    %130 = vmatpush1.xpose.msra.mxu0 0.0
    %131 = vmatprep.subr.mxu0 0.0
    %132 = vmatpush1.xpose.msra.mxu0 0.0
    %133 = vmatprep.subr.mxu0 0.0
    %134 = vmatpush1.xpose.msra.mxu0 0.0
    %135 = vmatprep.subr.mxu0 0.0
    %136 = vmatpush1.xpose.msra.mxu0 0.0
    %137 = vmatprep.subr.mxu0 0.0
    %138 = vmatpush1.xpose.msra.mxu0 0.0
    %139 = vmatprep.subr.mxu0 0.0
    %140 = vmatpush1.xpose.msra.mxu0 0.0
    %141 = vmatprep.subr.mxu0 0.0
    %142 = vmatpush1.xpose.msra.mxu0 0.0
    %143 = vmatprep.subr.mxu0 0.0
    %144 = vmatpush1.xpose.msra.mxu0 0.0
    %145 = vmatprep.mubr.f32.mxu0 0.0
    %146 = vmatmul.mubr.f32.gmra.mrb[0].mxu0 %v31
    %v147 = vpop.f32.mrb[0].mxu0
    %v148 = vadd.f32 0.0, %v147
    %v149 = vpop.f32.mrb[0].mxu0
    %150 = vdwg.mxu0
    %151 = vst [vmem:[#allocation2] sm:$0xff] %v148
    // Predicated region
    $region10: #{tpu_custom_call.1} parent=1 // pred_check
      _
    $region11: #{tpu_custom_call.1} parent=1 // pred_check_branch
      %153 = sbr.rel (0) target = $region13
    $region12: #{tpu_custom_call.1} parent=1 // pred_region
      %s155 = ssub.s32 128, 128
      %156 = vsyncadd [#allocation3], %s155
      %s158 = sshll.u32 [#allocation2], 4
      %s159 = int_to_ptr.vmem [resolvable:$true] %s158
      %161 = dma.vmem_to_hbm [thread:$0]  %s159, 128, %s2, [#allocation3]
    $region13: #{tpu_custom_call.1} parent=1 // pred_fallthru
      _
    // Predicated region
    $region14: #{tpu_custom_call.1} parent=1 // pred_check
      _
    $region15: #{tpu_custom_call.1} parent=1 // pred_check_branch
      %163 = sbr.rel (0) target = $region17
    $region16: #{tpu_custom_call.1} parent=1 // pred_region
      %164 = dma.done [#allocation3], 128
    $region17: #{tpu_custom_call.1} parent=1 // pred_fallthru
      _
    %165 = vsyncpa [#allocation3], 1

</llo_original>
